<compile_context>
chip_gen: v5e
topology: v5e:2x2
jax: 0.10.0
libtpu: 0.0.40
codegen_flags: <defaults>
</compile_context>

<pallas_src>
import jax
import jax.numpy as jnp
import numpy as np
from jax.experimental import pallas as pl
from jax.experimental.pallas import tpu as pltpu


def _match_kernel(feat_ref, lproj_ref, obj_ref,
                  wf_ref, w1_ref, b1_ref, w2_ref, b2_ref, w3_ref, b3_ref,
                  out_ref):
    # feat_ref : (TM, 128) bf16   proposal features (row tile)
    # lproj_ref: (TM, H)   f32    lang @ wf_lang + bf, per-row bias
    # obj_ref  : (TM, 1)   f32    objectness probability
    # wf_ref   : (128, H)  bf16 ; w1/w2: (H, H) bf16 ; w3: (H, 1) bf16
    # b1/b2    : (1, H)    f32  ; b3: (1,) f32 in SMEM
    # out_ref  : (TM, 1)   f32
    f32 = jnp.float32
    bf16 = jnp.bfloat16

    # fuse: Conv1d(Cin -> H, k=1) + ReLU  (language half pre-folded into lproj)
    h = jnp.dot(feat_ref[...], wf_ref[...], preferred_element_type=f32)
    h = jnp.maximum(h + lproj_ref[...], 0.0)

    # objectness mask (prob > 0.5), per-proposal sublane broadcast-multiply
    h = h * (obj_ref[...] > 0.5).astype(f32)

    # match[0..2]: Conv1d(H->H) + ReLU  (its BN is folded into w2'/b2')
    h = jnp.dot(h.astype(bf16), w1_ref[...], preferred_element_type=f32)
    h = jnp.maximum(h + b1_ref[...], 0.0)

    # match[3..5]: Conv1d(H->H) + ReLU  (its BN is folded into w3'/b3')
    h = jnp.dot(h.astype(bf16), w2_ref[...], preferred_element_type=f32)
    h = jnp.maximum(h + b2_ref[...], 0.0)

    # match[6]: Conv1d(H -> 1) as an MXU matmul; natural (TM, 1) layout out
    score = jnp.dot(h.astype(bf16), w3_ref[...], preferred_element_type=f32)
    out_ref[...] = score + b3_ref[0]


def _pick_row_tile(rows):
    # Prefer >= 2 tiles (keeps both v7x TensorCores busy) with the largest
    # row count possible: 256 fills the v6e/v7x 256-wide MXU, 128 already
    # fills v5e's 4x128x128 MXU.
    for tm in (512, 256, 128):
        if rows % tm == 0 and rows // tm >= 2:
            return tm
    for tm in (256, 128, 64, 32, 16):
        if rows % tm == 0:
            return tm
    return rows


def match_module_forward(feat, lang, obj_prob, p):
    """feat: (B, K, 128) f32, lang: (B, L) f32, obj_prob: (B, K) f32 -> (B, K) f32."""
    B, K, Cf = feat.shape
    H = p["wf"].shape[1]
    rows = B * K
    tm = _pick_row_tile(rows)
    bf16 = jnp.bfloat16

    # ---- parameter prep (trace-time, tiny) ----
    wf_feat = p["wf"][:Cf].astype(bf16)                          # (128, H)
    wf_lang = p["wf"][Cf:]                                       # (L,  H)
    w1 = p["w1"].astype(bf16)                                    # (H, H)
    b1 = p["b1"]                                                 # (1, H)
    # fold eval-mode BN1 into conv2 and BN2 into conv3
    w2p = (p["s1"][0][:, None] * p["w2"]).astype(bf16)           # (H, H)
    b2p = p["b2"] + p["t1"] @ p["w2"]                            # (1, H)
    w3t = p["w3"].T                                              # (H, 1)
    w3p = (p["s2"][0][:, None] * w3t).astype(bf16)               # (H, 1)
    b3p = (p["b3"][0, 0] + p["t2"][0] @ w3t[:, 0]).reshape(1)    # (1,)

    # ---- input prep: collapse batch into rows, pre-project language ----
    feat_rows = feat.reshape(rows, Cf).astype(bf16)              # (rows, 128)
    lproj = lang @ wf_lang + p["bf"]                             # (B, H)
    lproj_rows = jnp.broadcast_to(lproj[:, None, :], (B, K, H)).reshape(rows, H)
    obj_rows = obj_prob.reshape(rows, 1)                         # (rows, 1)

    full2d = lambda shape: pl.BlockSpec(shape, lambda i: (0, 0))
    row_block = lambda c: pl.BlockSpec((tm, c), lambda i: (i, 0))

    grid_spec = pltpu.PrefetchScalarGridSpec(
        num_scalar_prefetch=0,
        grid=(rows // tm,),
        in_specs=[
            row_block(Cf),                                       # feat rows (bf16)
            row_block(H),                                        # lang projection rows
            row_block(1),                                        # objectness prob rows
            full2d((Cf, H)),                                     # wf_feat
            full2d((H, H)), full2d((1, H)),                      # w1, b1
            full2d((H, H)), full2d((1, H)),                      # w2', b2'
            full2d((H, 1)),                                      # w3'
            pl.BlockSpec(memory_space=pltpu.MemorySpace.SMEM),   # b3' scalar
        ],
        out_specs=pl.BlockSpec((tm, 1), lambda i: (i, 0)),
    )

    out = pl.pallas_call(
        _match_kernel,
        out_shape=jax.ShapeDtypeStruct((rows, 1), jnp.float32),
        grid_spec=grid_spec,
        compiler_params=pltpu.CompilerParams(
            dimension_semantics=("parallel",)),
    )(feat_rows, lproj_rows, obj_rows,
      wf_feat, w1, b1, w2p, b2p, w3p, b3p)

    return out.reshape(B, K)


def make_params(key, lang_size, hidden_size):
    """Deterministic synthetic parameters matching the torch module shapes."""
    cin = lang_size + 128
    ks = jax.random.split(key, 12)
    f32 = jnp.float32
    eps = 1e-5

    def bn_fold(gamma, beta, mean, var):
        scale = gamma / jnp.sqrt(var + eps)
        shift = beta - mean * scale
        return scale[None, :], shift[None, :]

    # Conv weights stored transposed: (C_in, C_out) for y = x @ W
    wf = 0.05 * jax.random.normal(ks[0], (cin, hidden_size), f32)
    bf = 0.05 * jax.random.normal(ks[1], (1, hidden_size), f32)
    w1 = 0.05 * jax.random.normal(ks[2], (hidden_size, hidden_size), f32)
    b1 = 0.05 * jax.random.normal(ks[3], (1, hidden_size), f32)
    w2 = 0.05 * jax.random.normal(ks[4], (hidden_size, hidden_size), f32)
    b2 = 0.05 * jax.random.normal(ks[5], (1, hidden_size), f32)
    w3 = 0.05 * jax.random.normal(ks[6], (1, hidden_size), f32)
    b3 = 0.05 * jax.random.normal(ks[7], (1, 1), f32)

    g1 = 1.0 + 0.1 * jax.random.normal(ks[8], (hidden_size,), f32)
    be1 = 0.1 * jax.random.normal(ks[9], (hidden_size,), f32)
    m1 = 0.1 * jax.random.normal(ks[10], (hidden_size,), f32)
    v1 = 0.5 + jax.random.uniform(ks[11], (hidden_size,), f32)
    s1, t1 = bn_fold(g1, be1, m1, v1)

    g2 = 1.0 + 0.1 * jax.random.normal(ks[11], (hidden_size,), f32)
    be2 = 0.1 * jax.random.normal(ks[10], (hidden_size,), f32)
    m2 = 0.1 * jax.random.normal(ks[9], (hidden_size,), f32)
    v2 = 0.5 + jax.random.uniform(ks[8], (hidden_size,), f32)
    s2, t2 = bn_fold(g2, be2, m2, v2)

    return dict(wf=wf, bf=bf, w1=w1, b1=b1, s1=s1, t1=t1,
                w2=w2, b2=b2, s2=s2, t2=t2, w3=w3, b3=b3)


def reference_forward(feat, lang, obj_prob, p):
    """Pure-JAX f32 reference mirroring the torch forward (eval-mode BN)."""
    B, K, _ = feat.shape
    lang_b = jnp.broadcast_to(lang[:, None, :], (B, K, lang.shape[-1]))
    x = jnp.concatenate([feat, lang_b], axis=-1)
    h = jnp.maximum(jnp.einsum("bkc,ch->bkh", x, p["wf"]) + p["bf"], 0.0)
    mask = (obj_prob > 0.5).astype(jnp.float32)[..., None]
    h = h * mask
    h = jnp.maximum(jnp.einsum("bkc,ch->bkh", h, p["w1"]) + p["b1"], 0.0)
    h = h * p["s1"] + p["t1"]
    h = jnp.maximum(jnp.einsum("bkc,ch->bkh", h, p["w2"]) + p["b2"], 0.0)
    h = h * p["s2"] + p["t2"]
    return jnp.einsum("bkh,h->bk", h, p["w3"][0]) + p["b3"][0, 0]


if __name__ == "__main__":
    # Small, (8,128)-friendly shapes consistent with the module:
    #   scanrefer_features: (B, K, 128), lang_emb: (B, L), objectness_prob: (B, K)
    B, K, L, H = 2, 128, 128, 128

    key = jax.random.PRNGKey(0)
    k_feat, k_lang, k_obj, k_par = jax.random.split(key, 4)

    feat = jax.random.normal(k_feat, (B, K, 128), jnp.float32)
    lang = jax.random.normal(k_lang, (B, L), jnp.float32)
    obj_prob = jax.random.uniform(k_obj, (B, K), jnp.float32)

    params = make_params(k_par, lang_size=L, hidden_size=H)

    fwd = jax.jit(match_module_forward)
    cluster_ref = fwd(feat, lang, obj_prob, params)
    jax.block_until_ready(cluster_ref)

    expected = reference_forward(feat, lang, obj_prob, params)
    # Kernel matmuls use the bf16 MXU fast path with f32 accumulation, so the
    # comparison against the pure-f32 reference uses a relaxed tolerance.
    np.testing.assert_allclose(np.asarray(cluster_ref), np.asarray(expected),
                               rtol=5e-2, atol=5e-2)

    print("KERNEL_OK")
</pallas_src>

<mosaic_0001>
module attributes {stable_mosaic.version = 11 : i64} {
  func.func @_match_kernel(%arg0: i32, %arg1: memref<128x128xbf16, #tpu.memory_space<vmem>>, %arg2: memref<128x128xf32, #tpu.memory_space<vmem>>, %arg3: memref<128x1xf32, #tpu.memory_space<vmem>>, %arg4: memref<128x128xbf16, #tpu.memory_space<vmem>>, %arg5: memref<128x128xbf16, #tpu.memory_space<vmem>>, %arg6: memref<1x128xf32, #tpu.memory_space<vmem>>, %arg7: memref<128x128xbf16, #tpu.memory_space<vmem>>, %arg8: memref<1x128xf32, #tpu.memory_space<vmem>>, %arg9: memref<128x1xbf16, #tpu.memory_space<vmem>>, %arg10: memref<1xf32, #tpu.memory_space<smem>>, %arg11: memref<128x1xf32, #tpu.memory_space<vmem>>) attributes {dimension_semantics = [#tpu.dimension_semantics<parallel>], iteration_bounds = array<i64: 2>, scalar_prefetch = 0 : i64, scratch_operands = 0 : i64, tpu.core_type = #tpu.core_type<tc>, window_params = [{transform_indices = @transform_0, window_bounds = array<i64: 128, 128>}, {transform_indices = @transform_1, window_bounds = array<i64: 128, 128>}, {transform_indices = @transform_2, window_bounds = array<i64: 128, 1>}, {pipeline_mode = #tpu.pipeline_mode<synchronous>, transform_indices = @transform_3, window_bounds = array<i64: 128, 128>}, {pipeline_mode = #tpu.pipeline_mode<synchronous>, transform_indices = @transform_4, window_bounds = array<i64: 128, 128>}, {pipeline_mode = #tpu.pipeline_mode<synchronous>, transform_indices = @transform_5, window_bounds = array<i64: 1, 128>}, {pipeline_mode = #tpu.pipeline_mode<synchronous>, transform_indices = @transform_6, window_bounds = array<i64: 128, 128>}, {pipeline_mode = #tpu.pipeline_mode<synchronous>, transform_indices = @transform_7, window_bounds = array<i64: 1, 128>}, {pipeline_mode = #tpu.pipeline_mode<synchronous>, transform_indices = @transform_8, window_bounds = array<i64: 128, 1>}, {transform_indices = @transform_9, window_bounds = array<i64: 1>}, {transform_indices = @transform_10, window_bounds = array<i64: 128, 1>}]} {
    %c0 = arith.constant 0 : index
    %c0_0 = arith.constant 0 : index
    %0 = vector.load %arg1[%c0, %c0_0] : memref<128x128xbf16, #tpu.memory_space<vmem>>, vector<128x128xbf16>
    %c0_1 = arith.constant 0 : index
    %c0_2 = arith.constant 0 : index
    %1 = vector.load %arg4[%c0_1, %c0_2] : memref<128x128xbf16, #tpu.memory_space<vmem>>, vector<128x128xbf16>
    %cst = arith.constant dense<0.000000e+00> : vector<128x128xf32>
    %2 = tpu.matmul %0, %1, %cst {dimension_numbers = #tpu.dot_dimension_numbers<[1], [0], [0], [1], [0, 0, 1, 1], [], []>} : vector<128x128xbf16>, vector<128x128xbf16>, vector<128x128xf32> -> vector<128x128xf32>
    %c0_3 = arith.constant 0 : index
    %c0_4 = arith.constant 0 : index
    %3 = vector.load %arg2[%c0_3, %c0_4] : memref<128x128xf32, #tpu.memory_space<vmem>>, vector<128x128xf32>
    %4 = arith.addf %2, %3 : vector<128x128xf32>
    %cst_5 = arith.constant 0.000000e+00 : f32
    %5 = vector.broadcast %cst_5 : f32 to vector<128x128xf32>
    %6 = arith.maximumf %4, %5 : vector<128x128xf32>
    %c0_6 = arith.constant 0 : index
    %c0_7 = arith.constant 0 : index
    %7 = vector.load %arg3[%c0_6, %c0_7] : memref<128x1xf32, #tpu.memory_space<vmem>>, vector<128x1xf32>
    %cst_8 = arith.constant 5.000000e-01 : f32
    %8 = vector.broadcast %cst_8 : f32 to vector<128x1xf32>
    %9 = arith.cmpf ogt, %7, %8 : vector<128x1xf32>
    %10 = arith.extui %9 : vector<128x1xi1> to vector<128x1xi32>
    %11 = arith.sitofp %10 : vector<128x1xi32> to vector<128x1xf32>
    %12 = vector.broadcast %11 : vector<128x1xf32> to vector<128x128xf32>
    %13 = arith.mulf %6, %12 : vector<128x128xf32>
    %14 = arith.truncf %13 : vector<128x128xf32> to vector<128x128xbf16>
    %c0_9 = arith.constant 0 : index
    %c0_10 = arith.constant 0 : index
    %15 = vector.load %arg5[%c0_9, %c0_10] : memref<128x128xbf16, #tpu.memory_space<vmem>>, vector<128x128xbf16>
    %cst_11 = arith.constant dense<0.000000e+00> : vector<128x128xf32>
    %16 = tpu.matmul %14, %15, %cst_11 {dimension_numbers = #tpu.dot_dimension_numbers<[1], [0], [0], [1], [0, 0, 1, 1], [], []>} : vector<128x128xbf16>, vector<128x128xbf16>, vector<128x128xf32> -> vector<128x128xf32>
    %c0_12 = arith.constant 0 : index
    %c0_13 = arith.constant 0 : index
    %17 = vector.load %arg6[%c0_12, %c0_13] : memref<1x128xf32, #tpu.memory_space<vmem>>, vector<1x128xf32>
    %18 = vector.broadcast %17 : vector<1x128xf32> to vector<128x128xf32>
    %19 = arith.addf %16, %18 : vector<128x128xf32>
    %cst_14 = arith.constant 0.000000e+00 : f32
    %20 = vector.broadcast %cst_14 : f32 to vector<128x128xf32>
    %21 = arith.maximumf %19, %20 : vector<128x128xf32>
    %22 = arith.truncf %21 : vector<128x128xf32> to vector<128x128xbf16>
    %c0_15 = arith.constant 0 : index
    %c0_16 = arith.constant 0 : index
    %23 = vector.load %arg7[%c0_15, %c0_16] : memref<128x128xbf16, #tpu.memory_space<vmem>>, vector<128x128xbf16>
    %cst_17 = arith.constant dense<0.000000e+00> : vector<128x128xf32>
    %24 = tpu.matmul %22, %23, %cst_17 {dimension_numbers = #tpu.dot_dimension_numbers<[1], [0], [0], [1], [0, 0, 1, 1], [], []>} : vector<128x128xbf16>, vector<128x128xbf16>, vector<128x128xf32> -> vector<128x128xf32>
    %c0_18 = arith.constant 0 : index
    %c0_19 = arith.constant 0 : index
    %25 = vector.load %arg8[%c0_18, %c0_19] : memref<1x128xf32, #tpu.memory_space<vmem>>, vector<1x128xf32>
    %26 = vector.broadcast %25 : vector<1x128xf32> to vector<128x128xf32>
    %27 = arith.addf %24, %26 : vector<128x128xf32>
    %cst_20 = arith.constant 0.000000e+00 : f32
    %28 = vector.broadcast %cst_20 : f32 to vector<128x128xf32>
    %29 = arith.maximumf %27, %28 : vector<128x128xf32>
    %30 = arith.truncf %29 : vector<128x128xf32> to vector<128x128xbf16>
    %c0_21 = arith.constant 0 : index
    %c0_22 = arith.constant 0 : index
    %31 = vector.load %arg9[%c0_21, %c0_22] : memref<128x1xbf16, #tpu.memory_space<vmem>>, vector<128x1xbf16>
    %cst_23 = arith.constant dense<0.000000e+00> : vector<128x1xf32>
    %32 = tpu.matmul %30, %31, %cst_23 {dimension_numbers = #tpu.dot_dimension_numbers<[1], [0], [0], [1], [0, 0, 1, 1], [], []>} : vector<128x128xbf16>, vector<128x1xbf16>, vector<128x1xf32> -> vector<128x1xf32>
    %c0_24 = arith.constant 0 : index
    %33 = memref.load %arg10[%c0_24] : memref<1xf32, #tpu.memory_space<smem>>
    %34 = vector.broadcast %33 : f32 to vector<128x1xf32>
    %35 = arith.addf %32, %34 : vector<128x1xf32>
    %c0_25 = arith.constant 0 : index
    %c0_26 = arith.constant 0 : index
    %36 = vector.load %arg11[%c0_25, %c0_26] : memref<128x1xf32, #tpu.memory_space<vmem>>, vector<128x1xf32>
    tpu.vector_store %arg11[%c0_25, %c0_26], %35 {strides = array<i32>} : memref<128x1xf32, #tpu.memory_space<vmem>>, vector<128x1xf32>,
    return
  }
  func.func @transform_0(%arg0: i32) -> (i32, i32) {
    %c0_i32 = arith.constant 0 : i32
    %c0_i32_0 = arith.constant 0 : i32
    return %arg0, %c0_i32 : i32, i32
  }
  func.func @transform_1(%arg0: i32) -> (i32, i32) {
    %c0_i32 = arith.constant 0 : i32
    %c0_i32_0 = arith.constant 0 : i32
    return %arg0, %c0_i32 : i32, i32
  }
  func.func @transform_2(%arg0: i32) -> (i32, i32) {
    %c0_i32 = arith.constant 0 : i32
    %c0_i32_0 = arith.constant 0 : i32
    return %arg0, %c0_i32 : i32, i32
  }
  func.func @transform_3(%arg0: i32) -> (i32, i32) {
    %c0_i32 = arith.constant 0 : i32
    %c0_i32_0 = arith.constant 0 : i32
    %c0_i32_1 = arith.constant 0 : i32
    return %c0_i32, %c0_i32_0 : i32, i32
  }
  func.func @transform_4(%arg0: i32) -> (i32, i32) {
    %c0_i32 = arith.constant 0 : i32
    %c0_i32_0 = arith.constant 0 : i32
    %c0_i32_1 = arith.constant 0 : i32
    return %c0_i32, %c0_i32_0 : i32, i32
  }
  func.func @transform_5(%arg0: i32) -> (i32, i32) {
    %c0_i32 = arith.constant 0 : i32
    %c0_i32_0 = arith.constant 0 : i32
    %c0_i32_1 = arith.constant 0 : i32
    return %c0_i32, %c0_i32_0 : i32, i32
  }
  func.func @transform_6(%arg0: i32) -> (i32, i32) {
    %c0_i32 = arith.constant 0 : i32
    %c0_i32_0 = arith.constant 0 : i32
    %c0_i32_1 = arith.constant 0 : i32
    return %c0_i32, %c0_i32_0 : i32, i32
  }
  func.func @transform_7(%arg0: i32) -> (i32, i32) {
    %c0_i32 = arith.constant 0 : i32
    %c0_i32_0 = arith.constant 0 : i32
    %c0_i32_1 = arith.constant 0 : i32
    return %c0_i32, %c0_i32_0 : i32, i32
  }
  func.func @transform_8(%arg0: i32) -> (i32, i32) {
    %c0_i32 = arith.constant 0 : i32
    %c0_i32_0 = arith.constant 0 : i32
    %c0_i32_1 = arith.constant 0 : i32
    return %c0_i32, %c0_i32_0 : i32, i32
  }
  func.func @transform_9(%arg0: i32) -> i32 {
    %c0_i32 = arith.constant 0 : i32
    %c0_i32_0 = arith.constant 0 : i32
    return %c0_i32 : i32
  }
  func.func @transform_10(%arg0: i32) -> (i32, i32) {
    %c0_i32 = arith.constant 0 : i32
    %c0_i32_0 = arith.constant 0 : i32
    return %arg0, %c0_i32 : i32, i32
  }
}

</mosaic_0001>

<llo_original>
// kernel: match_module_forward.1
$region0: #{match_module_forward.1}
  #allocation0 [shape = 'u32[]', space=smem, size = 0x4, offset = 0x4, fixed_abs, tag = 'smem constant byte address 0x4 - core index']
  #allocation1 [shape = 'u32[72,128]{1,0:T(1,128)}', space=vmem, size = 0x9000, scoped, tag = 'internal scratch']
  #allocation2 [shape = 'f32[1]{0:T(128)S(6)}', space=smem, size = 0x200, scoped, tag = 'scoped memory for match_module_forward.1']
  %s0 = inlined_call_operand.vmem [shape: bf16[256,128], index: 0, kind: input, shape index: {}]
  %s1 = inlined_call_operand.vmem [shape: f32[256,128], index: 1, kind: input, shape index: {}]
  %s2 = inlined_call_operand.vmem [shape: f32[256,1], index: 2, kind: input, shape index: {}]
  %s3 = inlined_call_operand.vmem [shape: bf16[128,128], index: 3, kind: input, shape index: {}]
  %s4 = inlined_call_operand.vmem [shape: bf16[128,128], index: 4, kind: input, shape index: {}]
  %s5 = inlined_call_operand.vmem [shape: f32[1,128], index: 5, kind: input, shape index: {}]
  %s6 = inlined_call_operand.vmem [shape: bf16[128,128], index: 6, kind: input, shape index: {}]
  %s7 = inlined_call_operand.vmem [shape: f32[1,128], index: 7, kind: input, shape index: {}]
  %s8 = inlined_call_operand.vmem [shape: bf16[128,1], index: 8, kind: input, shape index: {}]
  %s9 = inlined_call_operand.<no memory space> [shape: f32[1], index: 9, kind: input, shape index: {}]
  %s10 = inlined_call_operand.vmem [shape: f32[256,1], index: 10, kind: output, shape index: {}]
  %s11 = sld [smem:[#allocation0]]
  $region73: #{match_module_forward.1} parent=0
    _
  %s13 = ssub.s32 1, %s11
  %s14 = scalar_select 0, %s13, %s11
  %15 = sst [smem:[#allocation2]] %s9
  loop: start=0, step=1, limit=4
  $region2: #{match_module_forward.1} parent=0 // loop_pre_header
    _
  $region3: #{match_module_forward.1} parent=0 // loop_header
    %s17 = sphi 0, %s21
    %p18 = scmp.ge.s32.totalorder %s17, 4
    %s27 = sphi 0, %s29
    %s30 = sphi 0, %s27
    %s31 = sphi 0, %s30
    %s47 = sphi 0, %s31
    %s53 = sphi 0, %s55
    %s56 = sphi 0, %s53
    %s57 = sphi 0, %s56
    %s73 = sphi 0, %s57
    %s79 = sphi 0, %s81
    %s82 = sphi 0, %s79
    %s83 = sphi 0, %s82
    %s99 = sphi 0, %s83
    %s103 = sphi 0, %s103
    %s105 = sphi 0, %s103
    %s106 = sphi 0, %s105
    %s120 = sphi 0, %s106
    %s124 = sphi 0, %s124
    %s126 = sphi 0, %s124
    %s127 = sphi 0, %s126
    %s141 = sphi 0, %s127
    %s145 = sphi 0, %s145
    %s147 = sphi 0, %s145
    %s148 = sphi 0, %s147
    %s162 = sphi 0, %s148
    %s166 = sphi 0, %s166
    %s168 = sphi 0, %s166
    %s169 = sphi 0, %s168
    %s183 = sphi 0, %s169
    %s187 = sphi 0, %s187
    %s189 = sphi 0, %s187
    %s190 = sphi 0, %s189
    %s204 = sphi 0, %s190
    %s208 = sphi 0, %s208
    %s210 = sphi 0, %s208
    %s211 = sphi 0, %s210
    %s225 = sphi 0, %s211
    %s229 = sphi 0, %s229
    %s231 = sphi 0, %s229
    %s232 = sphi 0, %s231
    %s246 = sphi 0, %s232
    %s252 = sphi 0, %s254
    %s255 = sphi 0, %s252
    %s256 = sphi 0, %s255
    %s272 = sphi 0, %s256
  $region4: #{match_module_forward.1} parent=0 // loop_header_branch
    %20 = sbr.rel (%p18) target = $region8
  $region5: #{match_module_forward.1} parent=0 // loop_body
    %s22 = ssub.s32 %s17, 1
    %s23 = ssub.s32 %s17, 2
    %s24 = sadd.s32 %s17, 1
    %s25 = ssub.s32 %s17, %s24
    %p26 = scmp.eq.s32.totalorder %s25, 0
    %s28 = sadd.s32 %s27, 1
    %s29 = scalar_select %p26, %s27, %s28
    %p32 = pneg %p26
    %p33 = scmp.eq.s32.totalorder %s17, 1
    %p34 = por %p32, %p33
    %p35 = scmp.ne.s32.totalorder %s27, %s30
    %p36 = scmp.eq.s32.totalorder %s17, 0
    %p37 = por %p35, %p36
    %p38 = scmp.ne.s32.totalorder %s27, %s30
    %p39 = scmp.eq.s32.totalorder %s22, 1
    %p40 = por %p38, %p39
    %p41 = scmp.ne.s32.totalorder %s30, %s31
    %p42 = scmp.eq.s32.totalorder %s22, 0
    %p43 = por %p41, %p42
    %p44 = scmp.ne.s32.totalorder %s30, %s31
    %p45 = scmp.eq.s32.totalorder %s23, 1
    %p46 = por %p44, %p45
    %p48 = scmp.ne.s32.totalorder %s31, %s47
    %p49 = scmp.eq.s32.totalorder %s23, 0
    %p50 = por %p48, %p49
    %s51 = ssub.s32 %s17, %s24
    %p52 = scmp.eq.s32.totalorder %s51, 0
    %s54 = sadd.s32 %s53, 1
    %s55 = scalar_select %p52, %s53, %s54
    %p58 = pneg %p52
    %p59 = scmp.eq.s32.totalorder %s17, 1
    %p60 = por %p58, %p59
    %p61 = scmp.ne.s32.totalorder %s53, %s56
    %p62 = scmp.eq.s32.totalorder %s17, 0
    %p63 = por %p61, %p62
    %p64 = scmp.ne.s32.totalorder %s53, %s56
    %p65 = scmp.eq.s32.totalorder %s22, 1
    %p66 = por %p64, %p65
    %p67 = scmp.ne.s32.totalorder %s56, %s57
    %p68 = scmp.eq.s32.totalorder %s22, 0
    %p69 = por %p67, %p68
    %p70 = scmp.ne.s32.totalorder %s56, %s57
    %p71 = scmp.eq.s32.totalorder %s23, 1
    %p72 = por %p70, %p71
    %p74 = scmp.ne.s32.totalorder %s57, %s73
    %p75 = scmp.eq.s32.totalorder %s23, 0
    %p76 = por %p74, %p75
    %s77 = ssub.s32 %s17, %s24
    %p78 = scmp.eq.s32.totalorder %s77, 0
    %s80 = sadd.s32 %s79, 1
    %s81 = scalar_select %p78, %s79, %s80
    %p84 = pneg %p78
    %p85 = scmp.eq.s32.totalorder %s17, 1
    %p86 = por %p84, %p85
    %p87 = scmp.ne.s32.totalorder %s79, %s82
    %p88 = scmp.eq.s32.totalorder %s17, 0
    %p89 = por %p87, %p88
    %p90 = scmp.ne.s32.totalorder %s79, %s82
    %p91 = scmp.eq.s32.totalorder %s22, 1
    %p92 = por %p90, %p91
    %p93 = scmp.ne.s32.totalorder %s82, %s83
    %p94 = scmp.eq.s32.totalorder %s22, 0
    %p95 = por %p93, %p94
    %p96 = scmp.ne.s32.totalorder %s82, %s83
    %p97 = scmp.eq.s32.totalorder %s23, 1
    %p98 = por %p96, %p97
    %p100 = scmp.ne.s32.totalorder %s83, %s99
    %p101 = scmp.eq.s32.totalorder %s23, 0
    %p102 = por %p100, %p101
    %s104 = sadd.s32 %s103, 1
    %p107 = scmp.eq.s32.totalorder %s17, 1
    %p108 = scmp.ne.s32.totalorder %s103, %s105
    %p109 = scmp.eq.s32.totalorder %s17, 0
    %p110 = por %p108, %p109
    %p111 = scmp.ne.s32.totalorder %s103, %s105
    %p112 = scmp.eq.s32.totalorder %s22, 1
    %p113 = por %p111, %p112
    %p114 = scmp.ne.s32.totalorder %s105, %s106
    %p115 = scmp.eq.s32.totalorder %s22, 0
    %p116 = por %p114, %p115
    %p117 = scmp.ne.s32.totalorder %s105, %s106
    %p118 = scmp.eq.s32.totalorder %s23, 1
    %p119 = por %p117, %p118
    %p121 = scmp.ne.s32.totalorder %s106, %s120
    %p122 = scmp.eq.s32.totalorder %s23, 0
    %p123 = por %p121, %p122
    %s125 = sadd.s32 %s124, 1
    %p128 = scmp.eq.s32.totalorder %s17, 1
    %p129 = scmp.ne.s32.totalorder %s124, %s126
    %p130 = scmp.eq.s32.totalorder %s17, 0
    %p131 = por %p129, %p130
    %p132 = scmp.ne.s32.totalorder %s124, %s126
    %p133 = scmp.eq.s32.totalorder %s22, 1
    %p134 = por %p132, %p133
    %p135 = scmp.ne.s32.totalorder %s126, %s127
    %p136 = scmp.eq.s32.totalorder %s22, 0
    %p137 = por %p135, %p136
    %p138 = scmp.ne.s32.totalorder %s126, %s127
    %p139 = scmp.eq.s32.totalorder %s23, 1
    %p140 = por %p138, %p139
    %p142 = scmp.ne.s32.totalorder %s127, %s141
    %p143 = scmp.eq.s32.totalorder %s23, 0
    %p144 = por %p142, %p143
    %s146 = sadd.s32 %s145, 1
    %p149 = scmp.eq.s32.totalorder %s17, 1
    %p150 = scmp.ne.s32.totalorder %s145, %s147
    %p151 = scmp.eq.s32.totalorder %s17, 0
    %p152 = por %p150, %p151
    %p153 = scmp.ne.s32.totalorder %s145, %s147
    %p154 = scmp.eq.s32.totalorder %s22, 1
    %p155 = por %p153, %p154
    %p156 = scmp.ne.s32.totalorder %s147, %s148
    %p157 = scmp.eq.s32.totalorder %s22, 0
    %p158 = por %p156, %p157
    %p159 = scmp.ne.s32.totalorder %s147, %s148
    %p160 = scmp.eq.s32.totalorder %s23, 1
    %p161 = por %p159, %p160
    %p163 = scmp.ne.s32.totalorder %s148, %s162
    %p164 = scmp.eq.s32.totalorder %s23, 0
    %p165 = por %p163, %p164
    %s167 = sadd.s32 %s166, 1
    %p170 = scmp.eq.s32.totalorder %s17, 1
    %p171 = scmp.ne.s32.totalorder %s166, %s168
    %p172 = scmp.eq.s32.totalorder %s17, 0
    %p173 = por %p171, %p172
    %p174 = scmp.ne.s32.totalorder %s166, %s168
    %p175 = scmp.eq.s32.totalorder %s22, 1
    %p176 = por %p174, %p175
    %p177 = scmp.ne.s32.totalorder %s168, %s169
    %p178 = scmp.eq.s32.totalorder %s22, 0
    %p179 = por %p177, %p178
    %p180 = scmp.ne.s32.totalorder %s168, %s169
    %p181 = scmp.eq.s32.totalorder %s23, 1
    %p182 = por %p180, %p181
    %p184 = scmp.ne.s32.totalorder %s169, %s183
    %p185 = scmp.eq.s32.totalorder %s23, 0
    %p186 = por %p184, %p185
    %s188 = sadd.s32 %s187, 1
    %p191 = scmp.eq.s32.totalorder %s17, 1
    %p192 = scmp.ne.s32.totalorder %s187, %s189
    %p193 = scmp.eq.s32.totalorder %s17, 0
    %p194 = por %p192, %p193
    %p195 = scmp.ne.s32.totalorder %s187, %s189
    %p196 = scmp.eq.s32.totalorder %s22, 1
    %p197 = por %p195, %p196
    %p198 = scmp.ne.s32.totalorder %s189, %s190
    %p199 = scmp.eq.s32.totalorder %s22, 0
    %p200 = por %p198, %p199
    %p201 = scmp.ne.s32.totalorder %s189, %s190
    %p202 = scmp.eq.s32.totalorder %s23, 1
    %p203 = por %p201, %p202
    %p205 = scmp.ne.s32.totalorder %s190, %s204
    %p206 = scmp.eq.s32.totalorder %s23, 0
    %p207 = por %p205, %p206
    %s209 = sadd.s32 %s208, 1
    %p212 = scmp.eq.s32.totalorder %s17, 1
    %p213 = scmp.ne.s32.totalorder %s208, %s210
    %p214 = scmp.eq.s32.totalorder %s17, 0
    %p215 = por %p213, %p214
    %p216 = scmp.ne.s32.totalorder %s208, %s210
    %p217 = scmp.eq.s32.totalorder %s22, 1
    %p218 = por %p216, %p217
    %p219 = scmp.ne.s32.totalorder %s210, %s211
    %p220 = scmp.eq.s32.totalorder %s22, 0
    %p221 = por %p219, %p220
    %p222 = scmp.ne.s32.totalorder %s210, %s211
    %p223 = scmp.eq.s32.totalorder %s23, 1
    %p224 = por %p222, %p223
    %p226 = scmp.ne.s32.totalorder %s211, %s225
    %p227 = scmp.eq.s32.totalorder %s23, 0
    %p228 = por %p226, %p227
    %s230 = sadd.s32 %s229, 1
    %p233 = scmp.eq.s32.totalorder %s17, 1
    %p234 = scmp.ne.s32.totalorder %s229, %s231
    %p235 = scmp.eq.s32.totalorder %s17, 0
    %p236 = por %p234, %p235
    %p237 = scmp.ne.s32.totalorder %s229, %s231
    %p238 = scmp.eq.s32.totalorder %s22, 1
    %p239 = por %p237, %p238
    %p240 = scmp.ne.s32.totalorder %s231, %s232
    %p241 = scmp.eq.s32.totalorder %s22, 0
    %p242 = por %p240, %p241
    %p243 = scmp.ne.s32.totalorder %s231, %s232
    %p244 = scmp.eq.s32.totalorder %s23, 1
    %p245 = por %p243, %p244
    %p247 = scmp.ne.s32.totalorder %s232, %s246
    %p248 = scmp.eq.s32.totalorder %s23, 0
    %p249 = por %p247, %p248
    %s250 = ssub.s32 %s17, %s24
    %p251 = scmp.eq.s32.totalorder %s250, 0
    %s253 = sadd.s32 %s252, 1
    %s254 = scalar_select %p251, %s252, %s253
    %p257 = pneg %p251
    %p258 = scmp.eq.s32.totalorder %s17, 1
    %p259 = por %p257, %p258
    %p260 = scmp.ne.s32.totalorder %s252, %s255
    %p261 = scmp.eq.s32.totalorder %s17, 0
    %p262 = por %p260, %p261
    %p263 = scmp.ne.s32.totalorder %s252, %s255
    %p264 = scmp.eq.s32.totalorder %s22, 1
    %p265 = por %p263, %p264
    %p266 = scmp.ne.s32.totalorder %s255, %s256
    %p267 = scmp.eq.s32.totalorder %s22, 0
    %p268 = por %p266, %p267
    %p269 = scmp.ne.s32.totalorder %s255, %s256
    %p270 = scmp.eq.s32.totalorder %s23, 1
    %p271 = por %p269, %p270
    %p273 = scmp.ne.s32.totalorder %s256, %s272
    %p274 = scmp.eq.s32.totalorder %s23, 0
    %p275 = por %p273, %p274
    %p276 = scmp.le.s32.totalorder 1, %s17
    %p277 = scmp.lt.s32.totalorder %s17, 3
    %p278 = pnand %p276, %p277
    %p279 = pneg %p278
    // Predicated region
    $region9: #{match_module_forward.1} parent=5 // pred_check
      _
    $region10: #{match_module_forward.1} parent=5 // pred_check_branch
      %281 = sbr.rel (%p278) target = $region12
    $region11: #{match_module_forward.1} parent=5 // pred_region
      %s282 = ssub.s32 %s17, 1
      // Predicated region
      $region13: #{match_module_forward.1} parent=11 // pred_check
        %p283 = pneg %p116
      $region14: #{match_module_forward.1} parent=11 // pred_check_branch
        %285 = sbr.rel (%p283) target = $region16
      $region15: #{match_module_forward.1} parent=11 // pred_region
        _
      $region16: #{match_module_forward.1} parent=11 // pred_fallthru
        _
      // Predicated region
      $region17: #{match_module_forward.1} parent=11 // pred_check
        %p286 = pneg %p137
      $region18: #{match_module_forward.1} parent=11 // pred_check_branch
        %288 = sbr.rel (%p286) target = $region20
      $region19: #{match_module_forward.1} parent=11 // pred_region
        _
      $region20: #{match_module_forward.1} parent=11 // pred_fallthru
        _
      // Predicated region
      $region21: #{match_module_forward.1} parent=11 // pred_check
        %p289 = pneg %p158
      $region22: #{match_module_forward.1} parent=11 // pred_check_branch
        %291 = sbr.rel (%p289) target = $region24
      $region23: #{match_module_forward.1} parent=11 // pred_region
        _
      $region24: #{match_module_forward.1} parent=11 // pred_fallthru
        _
      // Predicated region
      $region25: #{match_module_forward.1} parent=11 // pred_check
        %p292 = pneg %p179
      $region26: #{match_module_forward.1} parent=11 // pred_check_branch
        %294 = sbr.rel (%p292) target = $region28
      $region27: #{match_module_forward.1} parent=11 // pred_region
        _
      $region28: #{match_module_forward.1} parent=11 // pred_fallthru
        _
      // Predicated region
      $region29: #{match_module_forward.1} parent=11 // pred_check
        %p295 = pneg %p200
      $region30: #{match_module_forward.1} parent=11 // pred_check_branch
        %297 = sbr.rel (%p295) target = $region32
      $region31: #{match_module_forward.1} parent=11 // pred_region
        _
      $region32: #{match_module_forward.1} parent=11 // pred_fallthru
        _
      // Predicated region
      $region33: #{match_module_forward.1} parent=11 // pred_check
        %p298 = pneg %p221
      $region34: #{match_module_forward.1} parent=11 // pred_check_branch
        %300 = sbr.rel (%p298) target = $region36
      $region35: #{match_module_forward.1} parent=11 // pred_region
        _
      $region36: #{match_module_forward.1} parent=11 // pred_fallthru
        _
      // Predicated region
      $region37: #{match_module_forward.1} parent=11 // pred_check
        %p301 = pneg %p242
      $region38: #{match_module_forward.1} parent=11 // pred_check_branch
        %303 = sbr.rel (%p301) target = $region40
      $region39: #{match_module_forward.1} parent=11 // pred_region
        _
      $region40: #{match_module_forward.1} parent=11 // pred_fallthru
        _
    $region12: #{match_module_forward.1} parent=5 // pred_fallthru
      _
    %p304 = scmp.lt.s32.totalorder %s17, 2
    // Predicated region
    $region41: #{match_module_forward.1} parent=5 // pred_check
      %p305 = pneg %p304
    $region42: #{match_module_forward.1} parent=5 // pred_check_branch
      %307 = sbr.rel (%p305) target = $region44
    $region43: #{match_module_forward.1} parent=5 // pred_region
      // Predicated region
      $region45: #{match_module_forward.1} parent=43 // pred_check
        %p308 = pneg %p37
      $region46: #{match_module_forward.1} parent=43 // pred_check_branch
        %310 = sbr.rel (%p308) target = $region48
      $region47: #{match_module_forward.1} parent=43 // pred_region
        %s311 = smul.u32 16, %s17
        %p312 = scmp.lt.s32.totalorder %s311, 31
        %s313 = scalar_select %p312, %s311, 31
        %s314 = smul.addr %s313, 4
        %s315 = scalar_lea.vmem %s0, %s314
        %s316 = smul.u32 16, %s17
      $region48: #{match_module_forward.1} parent=43 // pred_fallthru
        _
      // Predicated region
      $region49: #{match_module_forward.1} parent=43 // pred_check
        %p317 = pneg %p63
      $region50: #{match_module_forward.1} parent=43 // pred_check_branch
        %319 = sbr.rel (%p317) target = $region52
      $region51: #{match_module_forward.1} parent=43 // pred_region
        %s320 = smul.u32 16, %s17
        %p321 = scmp.lt.s32.totalorder %s320, 31
        %s322 = scalar_select %p321, %s320, 31
        %s323 = smul.addr %s322, 8
        %s324 = scalar_lea.vmem %s1, %s323
        %s325 = smul.u32 16, %s17
      $region52: #{match_module_forward.1} parent=43 // pred_fallthru
        _
      // Predicated region
      $region53: #{match_module_forward.1} parent=43 // pred_check
        %p326 = pneg %p89
      $region54: #{match_module_forward.1} parent=43 // pred_check_branch
        %328 = sbr.rel (%p326) target = $region56
      $region55: #{match_module_forward.1} parent=43 // pred_region
        %s329 = smul.u32 16, %s17
        %p330 = scmp.lt.s32.totalorder %s329, 31
        %s331 = scalar_select %p330, %s329, 31
        %s332 = smul.addr %s331, 8
        %s333 = scalar_lea.vmem %s2, %s332
        %s334 = smul.u32 16, %s17
      $region56: #{match_module_forward.1} parent=43 // pred_fallthru
        _
    $region44: #{match_module_forward.1} parent=5 // pred_fallthru
      _
    %p335 = scmp.le.s32.totalorder 1, %s17
    %p336 = scmp.lt.s32.totalorder %s17, 3
    %p337 = pnand %p335, %p336
    %p338 = pneg %p337
    // Predicated region
    $region57: #{match_module_forward.1} parent=5 // pred_check
      _
    $region58: #{match_module_forward.1} parent=5 // pred_check_branch
      %340 = sbr.rel (%p337) target = $region60
    $region59: #{match_module_forward.1} parent=5 // pred_region
      %s341 = ssub.s32 %s17, 1
      %s342 = smul.u32 16, %s22
      %p343 = scmp.lt.s32.totalorder %s342, 31
      %s344 = scalar_select %p343, %s342, 31
      %s345 = smul.addr %s344, 4
      %s346 = scalar_lea.vmem %s0, %s345
      %p347 = pneg %p43
      %p348 = pneg %p40
      %s349 = smul.u32 16, %s22
      %p350 = scmp.lt.s32.totalorder %s349, 31
      %s351 = scalar_select %p350, %s349, 31
      %s352 = smul.addr %s351, 8
      %s353 = scalar_lea.vmem %s1, %s352
      %p354 = pneg %p69
      %p355 = pneg %p66
      %s356 = smul.u32 16, %s22
      %p357 = scmp.lt.s32.totalorder %s356, 31
      %s358 = scalar_select %p357, %s356, 31
      %s359 = smul.addr %s358, 8
      %s360 = scalar_lea.vmem %s2, %s359
      %p361 = pneg %p95
      %p362 = pneg %p92
      %p363 = pneg %p116
      %p364 = pneg %p113
      %p365 = pneg %p137
      %p366 = pneg %p134
      %p367 = pneg %p158
      %p368 = pneg %p155
      %p369 = pneg %p179
      %p370 = pneg %p176
      %p371 = pneg %p200
      %p372 = pneg %p197
      %p373 = pneg %p221
      %p374 = pneg %p218
      %p375 = pneg %p242
      %p376 = pneg %p239
      %p377 = pneg %p268
      %p378 = pneg %p265
      %s379 = smul.u32 16, %s22
      %p380 = scmp.lt.s32.totalorder %s379, 31
      %s381 = scalar_select %p380, %s379, 31
      %s382 = smul.addr %s381, 8
      %s383 = scalar_lea.vmem %s10, %s382
      %s384 = smul.u32 16, %s22
      %p385 = scmp.lt.s32.totalorder %s384, 31
      %s386 = scalar_select %p385, %s384, 31
      %s387 = smul.addr %s386, 4
      %s388 = scalar_lea.vmem %s0, %s387
      %s389 = smul.u32 16, %s22
      %s390 = smul.u32 16, %s22
      %p391 = scmp.lt.s32.totalorder %s390, 31
      %s392 = scalar_select %p391, %s390, 31
      %s393 = smul.addr %s392, 8
      %s394 = scalar_lea.vmem %s1, %s393
      %s395 = smul.u32 16, %s22
      %s396 = smul.u32 16, %s22
      %p397 = scmp.lt.s32.totalorder %s396, 31
      %s398 = scalar_select %p397, %s396, 31
      %s399 = smul.addr %s398, 8
      %s400 = scalar_lea.vmem %s2, %s399
      %s401 = smul.u32 16, %s22
      %s402 = smul.u32 16, %s22
      %p403 = scmp.lt.s32.totalorder %s402, 31
      %s404 = scalar_select %p403, %s402, 31
      %s405 = smul.addr %s404, 8
      %s406 = scalar_lea.vmem %s10, %s405
      %s407 = smul.u32 16, %s22
      %v408 = vld [vmem:[%s388] sm:$0xf]
      %v409 = vld [vmem:[%s388 + $0x4] sm:$0xf]
      %v410 = vld [vmem:[%s388 + $0x8] sm:$0xf]
      %v411 = vld [vmem:[%s388 + $0xc] sm:$0xf]
      %v412 = vld [vmem:[%s388 + $0x10] sm:$0xf]
      %v413 = vld [vmem:[%s388 + $0x14] sm:$0xf]
      %v414 = vld [vmem:[%s388 + $0x18] sm:$0xf]
      %v415 = vld [vmem:[%s388 + $0x1c] sm:$0xf]
      %v416 = vld [vmem:[%s388 + $0x20] sm:$0xf]
      %v417 = vld [vmem:[%s388 + $0x24] sm:$0xf]
      %v418 = vld [vmem:[%s388 + $0x28] sm:$0xf]
      %v419 = vld [vmem:[%s388 + $0x2c] sm:$0xf]
      %v420 = vld [vmem:[%s388 + $0x30] sm:$0xf]
      %v421 = vld [vmem:[%s388 + $0x34] sm:$0xf]
      %v422 = vld [vmem:[%s388 + $0x38] sm:$0xf]
      %v423 = vld [vmem:[%s388 + $0x3c] sm:$0xf]
      %v424 = vld [vmem:[%s3] sm:$0xf]
      %v425 = vld [vmem:[%s3 + $0x4] sm:$0xf]
      %v426 = vld [vmem:[%s3 + $0x8] sm:$0xf]
      %v427 = vld [vmem:[%s3 + $0xc] sm:$0xf]
      %v428 = vld [vmem:[%s3 + $0x10] sm:$0xf]
      %v429 = vld [vmem:[%s3 + $0x14] sm:$0xf]
      %v430 = vld [vmem:[%s3 + $0x18] sm:$0xf]
      %v431 = vld [vmem:[%s3 + $0x1c] sm:$0xf]
      %v432 = vld [vmem:[%s3 + $0x20] sm:$0xf]
      %v433 = vld [vmem:[%s3 + $0x24] sm:$0xf]
      %v434 = vld [vmem:[%s3 + $0x28] sm:$0xf]
      %v435 = vld [vmem:[%s3 + $0x2c] sm:$0xf]
      %v436 = vld [vmem:[%s3 + $0x30] sm:$0xf]
      %v437 = vld [vmem:[%s3 + $0x34] sm:$0xf]
      %v438 = vld [vmem:[%s3 + $0x38] sm:$0xf]
      %v439 = vld [vmem:[%s3 + $0x3c] sm:$0xf]
      %v440 = vld [vmem:[%s394] sm:$0xff]
      %v441 = vld [vmem:[%s394 + $0x8] sm:$0xff]
      %v442 = vld [vmem:[%s394 + $0x10] sm:$0xff]
      %v443 = vld [vmem:[%s394 + $0x18] sm:$0xff]
      %v444 = vld [vmem:[%s394 + $0x20] sm:$0xff]
      %v445 = vld [vmem:[%s394 + $0x28] sm:$0xff]
      %v446 = vld [vmem:[%s394 + $0x30] sm:$0xff]
      %v447 = vld [vmem:[%s394 + $0x38] sm:$0xff]
      %v448 = vld [vmem:[%s394 + $0x40] sm:$0xff]
      %v449 = vld [vmem:[%s394 + $0x48] sm:$0xff]
      %v450 = vld [vmem:[%s394 + $0x50] sm:$0xff]
      %v451 = vld [vmem:[%s394 + $0x58] sm:$0xff]
      %v452 = vld [vmem:[%s394 + $0x60] sm:$0xff]
      %v453 = vld [vmem:[%s394 + $0x68] sm:$0xff]
      %v454 = vld [vmem:[%s394 + $0x70] sm:$0xff]
      %v455 = vld [vmem:[%s394 + $0x78] sm:$0xff]
      %v472 = vunpack.c.l.b16 %v408
      %v473 = vunpack.c.l.b16 %v409
      %v474 = vunpack.c.l.b16 %v410
      %v475 = vunpack.c.l.b16 %v411
      %v476 = vunpack.c.l.b16 %v412
      %v477 = vunpack.c.l.b16 %v413
      %v478 = vunpack.c.l.b16 %v414
      %v479 = vunpack.c.l.b16 %v415
      %v480 = vunpack.c.l.b16 %v416
      %v481 = vunpack.c.l.b16 %v417
      %v482 = vunpack.c.l.b16 %v418
      %v483 = vunpack.c.l.b16 %v419
      %v484 = vunpack.c.l.b16 %v420
      %v485 = vunpack.c.l.b16 %v421
      %v486 = vunpack.c.l.b16 %v422
      %v487 = vunpack.c.l.b16 %v423
      %v488 = vpack.c.b16 %v473, %v472
      %v489 = vpack.c.b16 %v475, %v474
      %v490 = vpack.c.b16 %v477, %v476
      %v491 = vpack.c.b16 %v479, %v478
      %v492 = vpack.c.b16 %v481, %v480
      %v493 = vpack.c.b16 %v483, %v482
      %v494 = vpack.c.b16 %v485, %v484
      %v495 = vpack.c.b16 %v487, %v486
      %v520 = vunpack.c.l.b16 %v424
      %v521 = vunpack.c.l.b16 %v425
      %v522 = vunpack.c.l.b16 %v426
      %v523 = vunpack.c.l.b16 %v427
      %v524 = vunpack.c.l.b16 %v428
      %v525 = vunpack.c.l.b16 %v429
      %v526 = vunpack.c.l.b16 %v430
      %v527 = vunpack.c.l.b16 %v431
      %v528 = vunpack.c.l.b16 %v432
      %v529 = vunpack.c.l.b16 %v433
      %v530 = vunpack.c.l.b16 %v434
      %v531 = vunpack.c.l.b16 %v435
      %v532 = vunpack.c.l.b16 %v436
      %v533 = vunpack.c.l.b16 %v437
      %v534 = vunpack.c.l.b16 %v438
      %v535 = vunpack.c.l.b16 %v439
      %v536 = vpack.c.b16 %v521, %v520
      %v537 = vpack.c.b16 %v523, %v522
      %v538 = vpack.c.b16 %v525, %v524
      %v539 = vpack.c.b16 %v527, %v526
      %v540 = vpack.c.b16 %v529, %v528
      %v541 = vpack.c.b16 %v531, %v530
      %v542 = vpack.c.b16 %v533, %v532
      %v543 = vpack.c.b16 %v535, %v534
      %552 = vmatpush.bf16.msra.mxu0 %v543
      %553 = vmatpush.bf16.msra.mxu0 %v542
      %554 = vmatpush.bf16.msra.mxu0 %v541
      %555 = vmatpush.bf16.msra.mxu0 %v540
      %556 = vmatpush.bf16.msra.mxu0 %v539
      %557 = vmatpush.bf16.msra.mxu0 %v538
      %558 = vmatpush.bf16.msra.mxu0 %v537
      %559 = vmatpush.bf16.msra.mxu0 %v536
      %560 = vmatmul.bf16.gmra.mxu0 %v488
      %v561 = vpop.f32.mrf.mxu0
      %v562 = vadd.f32 %v440, %v561
      %v563 = vpop.f32.mrf.mxu0
      %v564 = vadd.f32 %v441, %v563
      %565 = vmatmul.bf16.gmra.mxu0 %v489
      %v566 = vpop.f32.mrf.mxu0
      %v567 = vadd.f32 %v442, %v566
      %v568 = vpop.f32.mrf.mxu0
      %v569 = vadd.f32 %v443, %v568
      %570 = vmatmul.bf16.gmra.mxu0 %v490
      %v571 = vpop.f32.mrf.mxu0
      %v572 = vadd.f32 %v444, %v571
      %v573 = vpop.f32.mrf.mxu0
      %v574 = vadd.f32 %v445, %v573
      %575 = vmatmul.bf16.gmra.mxu0 %v491
      %v576 = vpop.f32.mrf.mxu0
      %v577 = vadd.f32 %v446, %v576
      %v578 = vpop.f32.mrf.mxu0
      %v579 = vadd.f32 %v447, %v578
      %580 = vmatmul.bf16.gmra.mxu0 %v492
      %v581 = vpop.f32.mrf.mxu0
      %v582 = vadd.f32 %v448, %v581
      %v583 = vpop.f32.mrf.mxu0
      %v584 = vadd.f32 %v449, %v583
      %585 = vmatmul.bf16.gmra.mxu0 %v493
      %v586 = vpop.f32.mrf.mxu0
      %v587 = vadd.f32 %v450, %v586
      %v588 = vpop.f32.mrf.mxu0
      %v589 = vadd.f32 %v451, %v588
      %590 = vmatmul.bf16.gmra.mxu0 %v494
      %v591 = vpop.f32.mrf.mxu0
      %v592 = vadd.f32 %v452, %v591
      %v593 = vpop.f32.mrf.mxu0
      %v594 = vadd.f32 %v453, %v593
      %595 = vmatmul.bf16.gmra.mxu0 %v495
      %v596 = vpop.f32.mrf.mxu0
      %v597 = vadd.f32 %v454, %v596
      %v598 = vpop.f32.mrf.mxu0
      %v599 = vadd.f32 %v455, %v598
      %600 = vdwg.mxu0
      %v601 = vmax.f32 %v562, 0.0
      %v602 = vmax.f32 %v564, 0.0
      %v603 = vmax.f32 %v567, 0.0
      %v604 = vmax.f32 %v569, 0.0
      %v605 = vmax.f32 %v572, 0.0
      %v606 = vmax.f32 %v574, 0.0
      %v607 = vmax.f32 %v577, 0.0
      %v608 = vmax.f32 %v579, 0.0
      %v609 = vmax.f32 %v582, 0.0
      %v610 = vmax.f32 %v584, 0.0
      %v611 = vmax.f32 %v587, 0.0
      %v612 = vmax.f32 %v589, 0.0
      %v613 = vmax.f32 %v592, 0.0
      %v614 = vmax.f32 %v594, 0.0
      %v615 = vmax.f32 %v597, 0.0
      %v616 = vmax.f32 %v599, 0.0
      %v617 = vld [vmem:[%s400] sm:$0xff]
      %v618 = vld [vmem:[%s400 + $0x8] sm:$0xff]
      %v619 = vld [vmem:[%s400 + $0x10] sm:$0xff]
      %v620 = vld [vmem:[%s400 + $0x18] sm:$0xff]
      %v621 = vld [vmem:[%s400 + $0x20] sm:$0xff]
      %v622 = vld [vmem:[%s400 + $0x28] sm:$0xff]
      %v623 = vld [vmem:[%s400 + $0x30] sm:$0xff]
      %v624 = vld [vmem:[%s400 + $0x38] sm:$0xff]
      %v625 = vld [vmem:[%s400 + $0x40] sm:$0xff]
      %v626 = vld [vmem:[%s400 + $0x48] sm:$0xff]
      %v627 = vld [vmem:[%s400 + $0x50] sm:$0xff]
      %v628 = vld [vmem:[%s400 + $0x58] sm:$0xff]
      %v629 = vld [vmem:[%s400 + $0x60] sm:$0xff]
      %v630 = vld [vmem:[%s400 + $0x68] sm:$0xff]
      %v631 = vld [vmem:[%s400 + $0x70] sm:$0xff]
      %v632 = vld [vmem:[%s400 + $0x78] sm:$0xff]
      %vm633 = vcmp.gt.f32.partialorder %v617, 0.5
      %vm634 = vcmp.gt.f32.partialorder %v618, 0.5
      %vm635 = vcmp.gt.f32.partialorder %v619, 0.5
      %vm636 = vcmp.gt.f32.partialorder %v620, 0.5
      %vm637 = vcmp.gt.f32.partialorder %v621, 0.5
      %vm638 = vcmp.gt.f32.partialorder %v622, 0.5
      %vm639 = vcmp.gt.f32.partialorder %v623, 0.5
      %vm640 = vcmp.gt.f32.partialorder %v624, 0.5
      %vm641 = vcmp.gt.f32.partialorder %v625, 0.5
      %vm642 = vcmp.gt.f32.partialorder %v626, 0.5
      %vm643 = vcmp.gt.f32.partialorder %v627, 0.5
      %vm644 = vcmp.gt.f32.partialorder %v628, 0.5
      %vm645 = vcmp.gt.f32.partialorder %v629, 0.5
      %vm646 = vcmp.gt.f32.partialorder %v630, 0.5
      %vm647 = vcmp.gt.f32.partialorder %v631, 0.5
      %vm648 = vcmp.gt.f32.partialorder %v632, 0.5
      %v649 = vsel %vm633, 1, 0
      %v650 = vsel %vm634, 1, 0
      %v651 = vsel %vm635, 1, 0
      %v652 = vsel %vm636, 1, 0
      %v653 = vsel %vm637, 1, 0
      %v654 = vsel %vm638, 1, 0
      %v655 = vsel %vm639, 1, 0
      %v656 = vsel %vm640, 1, 0
      %v657 = vsel %vm641, 1, 0
      %v658 = vsel %vm642, 1, 0
      %v659 = vsel %vm643, 1, 0
      %v660 = vsel %vm644, 1, 0
      %v661 = vsel %vm645, 1, 0
      %v662 = vsel %vm646, 1, 0
      %v663 = vsel %vm647, 1, 0
      %v664 = vsel %vm648, 1, 0
      %v665 = vcvt.s32.f32 %v649
      %v666 = vcvt.s32.f32 %v650
      %v667 = vcvt.s32.f32 %v651
      %v668 = vcvt.s32.f32 %v652
      %v669 = vcvt.s32.f32 %v653
      %v670 = vcvt.s32.f32 %v654
      %v671 = vcvt.s32.f32 %v655
      %v672 = vcvt.s32.f32 %v656
      %v673 = vcvt.s32.f32 %v657
      %v674 = vcvt.s32.f32 %v658
      %v675 = vcvt.s32.f32 %v659
      %v676 = vcvt.s32.f32 %v660
      %v677 = vcvt.s32.f32 %v661
      %v678 = vcvt.s32.f32 %v662
      %v679 = vcvt.s32.f32 %v663
      %v680 = vcvt.s32.f32 %v664
      %682 = vset.pattern.permute.xlu0 0
      %683 = vperm.xlu0 %682, %v665
      %v684 = vpop.permute.xlu0 %683
      %687 = vset.pattern.permute.xlu0 0
      %688 = vperm.xlu0 %687, %v666
      %v689 = vpop.permute.xlu0 %688
      %692 = vset.pattern.permute.xlu0 0
      %693 = vperm.xlu0 %692, %v667
      %v694 = vpop.permute.xlu0 %693
      %697 = vset.pattern.permute.xlu0 0
      %698 = vperm.xlu0 %697, %v668
      %v699 = vpop.permute.xlu0 %698
      %702 = vset.pattern.permute.xlu0 0
      %703 = vperm.xlu0 %702, %v669
      %v704 = vpop.permute.xlu0 %703
      %707 = vset.pattern.permute.xlu0 0
      %708 = vperm.xlu0 %707, %v670
      %v709 = vpop.permute.xlu0 %708
      %712 = vset.pattern.permute.xlu0 0
      %713 = vperm.xlu0 %712, %v671
      %v714 = vpop.permute.xlu0 %713
      %717 = vset.pattern.permute.xlu0 0
      %718 = vperm.xlu0 %717, %v672
      %v719 = vpop.permute.xlu0 %718
      %722 = vset.pattern.permute.xlu0 0
      %723 = vperm.xlu0 %722, %v673
      %v724 = vpop.permute.xlu0 %723
      %727 = vset.pattern.permute.xlu0 0
      %728 = vperm.xlu0 %727, %v674
      %v729 = vpop.permute.xlu0 %728
      %732 = vset.pattern.permute.xlu0 0
      %733 = vperm.xlu0 %732, %v675
      %v734 = vpop.permute.xlu0 %733
      %737 = vset.pattern.permute.xlu0 0
      %738 = vperm.xlu0 %737, %v676
      %v739 = vpop.permute.xlu0 %738
      %742 = vset.pattern.permute.xlu0 0
      %743 = vperm.xlu0 %742, %v677
      %v744 = vpop.permute.xlu0 %743
      %747 = vset.pattern.permute.xlu0 0
      %748 = vperm.xlu0 %747, %v678
      %v749 = vpop.permute.xlu0 %748
      %752 = vset.pattern.permute.xlu0 0
      %753 = vperm.xlu0 %752, %v679
      %v754 = vpop.permute.xlu0 %753
      %757 = vset.pattern.permute.xlu0 0
      %758 = vperm.xlu0 %757, %v680
      %v759 = vpop.permute.xlu0 %758
      %v761 = vmul.f32 %v601, %v684
      %v762 = vmul.f32 %v602, %v689
      %v763 = vmul.f32 %v603, %v694
      %v764 = vmul.f32 %v604, %v699
      %v765 = vmul.f32 %v605, %v704
      %v766 = vmul.f32 %v606, %v709
      %v767 = vmul.f32 %v607, %v714
      %v768 = vmul.f32 %v608, %v719
      %v769 = vmul.f32 %v609, %v724
      %v770 = vmul.f32 %v610, %v729
      %v771 = vmul.f32 %v611, %v734
      %v772 = vmul.f32 %v612, %v739
      %v773 = vmul.f32 %v613, %v744
      %v774 = vmul.f32 %v614, %v749
      %v775 = vmul.f32 %v615, %v754
      %v776 = vmul.f32 %v616, %v759
      %v777 = vpack.c.bf16 %v762, %v761
      %v778 = vpack.c.bf16 %v764, %v763
      %v779 = vpack.c.bf16 %v766, %v765
      %v780 = vpack.c.bf16 %v768, %v767
      %v781 = vpack.c.bf16 %v770, %v769
      %v782 = vpack.c.bf16 %v772, %v771
      %v783 = vpack.c.bf16 %v774, %v773
      %v784 = vpack.c.bf16 %v776, %v775
      %v785 = vld [vmem:[%s4] sm:$0xf]
      %v786 = vld [vmem:[%s4 + $0x4] sm:$0xf]
      %v787 = vld [vmem:[%s4 + $0x8] sm:$0xf]
      %v788 = vld [vmem:[%s4 + $0xc] sm:$0xf]
      %v789 = vld [vmem:[%s4 + $0x10] sm:$0xf]
      %v790 = vld [vmem:[%s4 + $0x14] sm:$0xf]
      %v791 = vld [vmem:[%s4 + $0x18] sm:$0xf]
      %v792 = vld [vmem:[%s4 + $0x1c] sm:$0xf]
      %v793 = vld [vmem:[%s4 + $0x20] sm:$0xf]
      %v794 = vld [vmem:[%s4 + $0x24] sm:$0xf]
      %v795 = vld [vmem:[%s4 + $0x28] sm:$0xf]
      %v796 = vld [vmem:[%s4 + $0x2c] sm:$0xf]
      %v797 = vld [vmem:[%s4 + $0x30] sm:$0xf]
      %v798 = vld [vmem:[%s4 + $0x34] sm:$0xf]
      %v799 = vld [vmem:[%s4 + $0x38] sm:$0xf]
      %v800 = vld [vmem:[%s4 + $0x3c] sm:$0xf]
      %v801 = vld [vmem:[%s5] sm:$0x1]
      %v803 = vperm.slane %v801, 0
      %v821 = vunpack.c.l.b16 %v785
      %v822 = vunpack.c.l.b16 %v786
      %v823 = vunpack.c.l.b16 %v787
      %v824 = vunpack.c.l.b16 %v788
      %v825 = vunpack.c.l.b16 %v789
      %v826 = vunpack.c.l.b16 %v790
      %v827 = vunpack.c.l.b16 %v791
      %v828 = vunpack.c.l.b16 %v792
      %v829 = vunpack.c.l.b16 %v793
      %v830 = vunpack.c.l.b16 %v794
      %v831 = vunpack.c.l.b16 %v795
      %v832 = vunpack.c.l.b16 %v796
      %v833 = vunpack.c.l.b16 %v797
      %v834 = vunpack.c.l.b16 %v798
      %v835 = vunpack.c.l.b16 %v799
      %v836 = vunpack.c.l.b16 %v800
      %v837 = vpack.c.b16 %v822, %v821
      %v838 = vpack.c.b16 %v824, %v823
      %v839 = vpack.c.b16 %v826, %v825
      %v840 = vpack.c.b16 %v828, %v827
      %v841 = vpack.c.b16 %v830, %v829
      %v842 = vpack.c.b16 %v832, %v831
      %v843 = vpack.c.b16 %v834, %v833
      %v844 = vpack.c.b16 %v836, %v835
      %853 = vmatpush.bf16.msra.mxu0 %v844
      %854 = vmatpush.bf16.msra.mxu0 %v843
      %855 = vmatpush.bf16.msra.mxu0 %v842
      %856 = vmatpush.bf16.msra.mxu0 %v841
      %857 = vmatpush.bf16.msra.mxu0 %v840
      %858 = vmatpush.bf16.msra.mxu0 %v839
      %859 = vmatpush.bf16.msra.mxu0 %v838
      %860 = vmatpush.bf16.msra.mxu0 %v837
      %861 = vmatmul.bf16.gmra.mxu0 %v777
      %v862 = vpop.f32.mrf.mxu0
      %v863 = vadd.f32 %v803, %v862
      %v864 = vpop.f32.mrf.mxu0
      %v865 = vadd.f32 %v803, %v864
      %866 = vmatmul.bf16.gmra.mxu0 %v778
      %v867 = vpop.f32.mrf.mxu0
      %v868 = vadd.f32 %v803, %v867
      %v869 = vpop.f32.mrf.mxu0
      %v870 = vadd.f32 %v803, %v869
      %871 = vmatmul.bf16.gmra.mxu0 %v779
      %v872 = vpop.f32.mrf.mxu0
      %v873 = vadd.f32 %v803, %v872
      %v874 = vpop.f32.mrf.mxu0
      %v875 = vadd.f32 %v803, %v874
      %876 = vmatmul.bf16.gmra.mxu0 %v780
      %v877 = vpop.f32.mrf.mxu0
      %v878 = vadd.f32 %v803, %v877
      %v879 = vpop.f32.mrf.mxu0
      %v880 = vadd.f32 %v803, %v879
      %881 = vmatmul.bf16.gmra.mxu0 %v781
      %v882 = vpop.f32.mrf.mxu0
      %v883 = vadd.f32 %v803, %v882
      %v884 = vpop.f32.mrf.mxu0
      %v885 = vadd.f32 %v803, %v884
      %886 = vmatmul.bf16.gmra.mxu0 %v782
      %v887 = vpop.f32.mrf.mxu0
      %v888 = vadd.f32 %v803, %v887
      %v889 = vpop.f32.mrf.mxu0
      %v890 = vadd.f32 %v803, %v889
      %891 = vmatmul.bf16.gmra.mxu0 %v783
      %v892 = vpop.f32.mrf.mxu0
      %v893 = vadd.f32 %v803, %v892
      %v894 = vpop.f32.mrf.mxu0
      %v895 = vadd.f32 %v803, %v894
      %896 = vmatmul.bf16.gmra.mxu0 %v784
      %v897 = vpop.f32.mrf.mxu0
      %v898 = vadd.f32 %v803, %v897
      %v899 = vpop.f32.mrf.mxu0
      %v900 = vadd.f32 %v803, %v899
      %901 = vdwg.mxu0
      %v902 = vmax.f32 %v863, 0.0
      %v903 = vmax.f32 %v865, 0.0
      %v904 = vmax.f32 %v868, 0.0
      %v905 = vmax.f32 %v870, 0.0
      %v906 = vmax.f32 %v873, 0.0
      %v907 = vmax.f32 %v875, 0.0
      %v908 = vmax.f32 %v878, 0.0
      %v909 = vmax.f32 %v880, 0.0
      %v910 = vmax.f32 %v883, 0.0
      %v911 = vmax.f32 %v885, 0.0
      %v912 = vmax.f32 %v888, 0.0
      %v913 = vmax.f32 %v890, 0.0
      %v914 = vmax.f32 %v893, 0.0
      %v915 = vmax.f32 %v895, 0.0
      %v916 = vmax.f32 %v898, 0.0
      %v917 = vmax.f32 %v900, 0.0
      %v918 = vpack.c.bf16 %v903, %v902
      %v919 = vpack.c.bf16 %v905, %v904
      %v920 = vpack.c.bf16 %v907, %v906
      %v921 = vpack.c.bf16 %v909, %v908
      %v922 = vpack.c.bf16 %v911, %v910
      %v923 = vpack.c.bf16 %v913, %v912
      %v924 = vpack.c.bf16 %v915, %v914
      %v925 = vpack.c.bf16 %v917, %v916
      %v926 = vld [vmem:[%s6] sm:$0xf]
      %v927 = vld [vmem:[%s6 + $0x4] sm:$0xf]
      %v928 = vld [vmem:[%s6 + $0x8] sm:$0xf]
      %v929 = vld [vmem:[%s6 + $0xc] sm:$0xf]
      %v930 = vld [vmem:[%s6 + $0x10] sm:$0xf]
      %v931 = vld [vmem:[%s6 + $0x14] sm:$0xf]
      %v932 = vld [vmem:[%s6 + $0x18] sm:$0xf]
      %v933 = vld [vmem:[%s6 + $0x1c] sm:$0xf]
      %v934 = vld [vmem:[%s6 + $0x20] sm:$0xf]
      %v935 = vld [vmem:[%s6 + $0x24] sm:$0xf]
      %v936 = vld [vmem:[%s6 + $0x28] sm:$0xf]
      %v937 = vld [vmem:[%s6 + $0x2c] sm:$0xf]
      %v938 = vld [vmem:[%s6 + $0x30] sm:$0xf]
      %v939 = vld [vmem:[%s6 + $0x34] sm:$0xf]
      %v940 = vld [vmem:[%s6 + $0x38] sm:$0xf]
      %v941 = vld [vmem:[%s6 + $0x3c] sm:$0xf]
      %v942 = vld [vmem:[%s7] sm:$0x1]
      %v944 = vperm.slane %v942, 0
      %v962 = vunpack.c.l.b16 %v926
      %v963 = vunpack.c.l.b16 %v927
      %v964 = vunpack.c.l.b16 %v928
      %v965 = vunpack.c.l.b16 %v929
      %v966 = vunpack.c.l.b16 %v930
      %v967 = vunpack.c.l.b16 %v931
      %v968 = vunpack.c.l.b16 %v932
      %v969 = vunpack.c.l.b16 %v933
      %v970 = vunpack.c.l.b16 %v934
      %v971 = vunpack.c.l.b16 %v935
      %v972 = vunpack.c.l.b16 %v936
      %v973 = vunpack.c.l.b16 %v937
      %v974 = vunpack.c.l.b16 %v938
      %v975 = vunpack.c.l.b16 %v939
      %v976 = vunpack.c.l.b16 %v940
      %v977 = vunpack.c.l.b16 %v941
      %v978 = vpack.c.b16 %v963, %v962
      %v979 = vpack.c.b16 %v965, %v964
      %v980 = vpack.c.b16 %v967, %v966
      %v981 = vpack.c.b16 %v969, %v968
      %v982 = vpack.c.b16 %v971, %v970
      %v983 = vpack.c.b16 %v973, %v972
      %v984 = vpack.c.b16 %v975, %v974
      %v985 = vpack.c.b16 %v977, %v976
      %994 = vmatpush.bf16.msra.mxu0 %v985
      %995 = vmatpush.bf16.msra.mxu0 %v984
      %996 = vmatpush.bf16.msra.mxu0 %v983
      %997 = vmatpush.bf16.msra.mxu0 %v982
      %998 = vmatpush.bf16.msra.mxu0 %v981
      %999 = vmatpush.bf16.msra.mxu0 %v980
      %1000 = vmatpush.bf16.msra.mxu0 %v979
      %1001 = vmatpush.bf16.msra.mxu0 %v978
      %1002 = vmatmul.bf16.gmra.mxu0 %v918
      %v1003 = vpop.f32.mrf.mxu0
      %v1004 = vadd.f32 %v944, %v1003
      %v1005 = vpop.f32.mrf.mxu0
      %v1006 = vadd.f32 %v944, %v1005
      %1007 = vmatmul.bf16.gmra.mxu0 %v919
      %v1008 = vpop.f32.mrf.mxu0
      %v1009 = vadd.f32 %v944, %v1008
      %v1010 = vpop.f32.mrf.mxu0
      %v1011 = vadd.f32 %v944, %v1010
      %1012 = vmatmul.bf16.gmra.mxu0 %v920
      %v1013 = vpop.f32.mrf.mxu0
      %v1014 = vadd.f32 %v944, %v1013
      %v1015 = vpop.f32.mrf.mxu0
      %v1016 = vadd.f32 %v944, %v1015
      %1017 = vmatmul.bf16.gmra.mxu0 %v921
      %v1018 = vpop.f32.mrf.mxu0
      %v1019 = vadd.f32 %v944, %v1018
      %v1020 = vpop.f32.mrf.mxu0
      %v1021 = vadd.f32 %v944, %v1020
      %1022 = vmatmul.bf16.gmra.mxu0 %v922
      %v1023 = vpop.f32.mrf.mxu0
      %v1024 = vadd.f32 %v944, %v1023
      %v1025 = vpop.f32.mrf.mxu0
      %v1026 = vadd.f32 %v944, %v1025
      %1027 = vmatmul.bf16.gmra.mxu0 %v923
      %v1028 = vpop.f32.mrf.mxu0
      %v1029 = vadd.f32 %v944, %v1028
      %v1030 = vpop.f32.mrf.mxu0
      %v1031 = vadd.f32 %v944, %v1030
      %1032 = vmatmul.bf16.gmra.mxu0 %v924
      %v1033 = vpop.f32.mrf.mxu0
      %v1034 = vadd.f32 %v944, %v1033
      %v1035 = vpop.f32.mrf.mxu0
      %v1036 = vadd.f32 %v944, %v1035
      %1037 = vmatmul.bf16.gmra.mxu0 %v925
      %v1038 = vpop.f32.mrf.mxu0
      %v1039 = vadd.f32 %v944, %v1038
      %v1040 = vpop.f32.mrf.mxu0
      %v1041 = vadd.f32 %v944, %v1040
      %1042 = vdwg.mxu0
      %v1043 = vmax.f32 %v1004, 0.0
      %v1044 = vmax.f32 %v1006, 0.0
      %v1045 = vmax.f32 %v1009, 0.0
      %v1046 = vmax.f32 %v1011, 0.0
      %v1047 = vmax.f32 %v1014, 0.0
      %v1048 = vmax.f32 %v1016, 0.0
      %v1049 = vmax.f32 %v1019, 0.0
      %v1050 = vmax.f32 %v1021, 0.0
      %v1051 = vmax.f32 %v1024, 0.0
      %v1052 = vmax.f32 %v1026, 0.0
      %v1053 = vmax.f32 %v1029, 0.0
      %v1054 = vmax.f32 %v1031, 0.0
      %v1055 = vmax.f32 %v1034, 0.0
      %v1056 = vmax.f32 %v1036, 0.0
      %v1057 = vmax.f32 %v1039, 0.0
      %v1058 = vmax.f32 %v1041, 0.0
      %v1059 = vpack.c.bf16 %v1044, %v1043
      %v1060 = vpack.c.bf16 %v1046, %v1045
      %v1061 = vpack.c.bf16 %v1048, %v1047
      %v1062 = vpack.c.bf16 %v1050, %v1049
      %v1063 = vpack.c.bf16 %v1052, %v1051
      %v1064 = vpack.c.bf16 %v1054, %v1053
      %v1065 = vpack.c.bf16 %v1056, %v1055
      %v1066 = vpack.c.bf16 %v1058, %v1057
      %v1067 = vld [vmem:[%s8] sm:$0xf]
      %v1068 = vld [vmem:[%s8 + $0x4] sm:$0xf]
      %v1069 = vld [vmem:[%s8 + $0x8] sm:$0xf]
      %v1070 = vld [vmem:[%s8 + $0xc] sm:$0xf]
      %v1071 = vld [vmem:[%s8 + $0x10] sm:$0xf]
      %v1072 = vld [vmem:[%s8 + $0x14] sm:$0xf]
      %v1073 = vld [vmem:[%s8 + $0x18] sm:$0xf]
      %v1074 = vld [vmem:[%s8 + $0x1c] sm:$0xf]
      %v1075 = vld [vmem:[%s8 + $0x20] sm:$0xf]
      %v1076 = vld [vmem:[%s8 + $0x24] sm:$0xf]
      %v1077 = vld [vmem:[%s8 + $0x28] sm:$0xf]
      %v1078 = vld [vmem:[%s8 + $0x2c] sm:$0xf]
      %v1079 = vld [vmem:[%s8 + $0x30] sm:$0xf]
      %v1080 = vld [vmem:[%s8 + $0x34] sm:$0xf]
      %v1081 = vld [vmem:[%s8 + $0x38] sm:$0xf]
      %v1082 = vld [vmem:[%s8 + $0x3c] sm:$0xf]
      %s1083 = sld [smem:[#allocation2]]
      %v1084 = vstv %s1083
      %v1101 = vunpack.c.l.b16 %v1067
      %v1102 = vunpack.c.l.b16 %v1068
      %v1103 = vunpack.c.l.b16 %v1069
      %v1104 = vunpack.c.l.b16 %v1070
      %v1105 = vunpack.c.l.b16 %v1071
      %v1106 = vunpack.c.l.b16 %v1072
      %v1107 = vunpack.c.l.b16 %v1073
      %v1108 = vunpack.c.l.b16 %v1074
      %v1109 = vunpack.c.l.b16 %v1075
      %v1110 = vunpack.c.l.b16 %v1076
      %v1111 = vunpack.c.l.b16 %v1077
      %v1112 = vunpack.c.l.b16 %v1078
      %v1113 = vunpack.c.l.b16 %v1079
      %v1114 = vunpack.c.l.b16 %v1080
      %v1115 = vunpack.c.l.b16 %v1081
      %v1116 = vunpack.c.l.b16 %v1082
      %v1117 = vpack.c.b16 %v1102, %v1101
      %v1118 = vpack.c.b16 %v1104, %v1103
      %v1119 = vpack.c.b16 %v1106, %v1105
      %v1120 = vpack.c.b16 %v1108, %v1107
      %v1121 = vpack.c.b16 %v1110, %v1109
      %v1122 = vpack.c.b16 %v1112, %v1111
      %v1123 = vpack.c.b16 %v1114, %v1113
      %v1124 = vpack.c.b16 %v1116, %v1115
      %1133 = vmatpush.bf16.msra.mxu0 %v1124
      %1134 = vmatpush.bf16.msra.mxu0 %v1123
      %1135 = vmatpush.bf16.msra.mxu0 %v1122
      %1136 = vmatpush.bf16.msra.mxu0 %v1121
      %1137 = vmatpush.bf16.msra.mxu0 %v1120
      %1138 = vmatpush.bf16.msra.mxu0 %v1119
      %1139 = vmatpush.bf16.msra.mxu0 %v1118
      %1140 = vmatpush.bf16.msra.mxu0 %v1117
      %1141 = vmatmul.bf16.gmra.mxu0 %v1059
      %v1142 = vpop.f32.mrf.mxu0
      %v1143 = vadd.f32 %v1084, %v1142
      %v1144 = vpop.f32.mrf.mxu0
      %v1145 = vadd.f32 %v1084, %v1144
      %1146 = vmatmul.bf16.gmra.mxu0 %v1060
      %v1147 = vpop.f32.mrf.mxu0
      %v1148 = vadd.f32 %v1084, %v1147
      %v1149 = vpop.f32.mrf.mxu0
      %v1150 = vadd.f32 %v1084, %v1149
      %1151 = vmatmul.bf16.gmra.mxu0 %v1061
      %v1152 = vpop.f32.mrf.mxu0
      %v1153 = vadd.f32 %v1084, %v1152
      %v1154 = vpop.f32.mrf.mxu0
      %v1155 = vadd.f32 %v1084, %v1154
      %1156 = vmatmul.bf16.gmra.mxu0 %v1062
      %v1157 = vpop.f32.mrf.mxu0
      %v1158 = vadd.f32 %v1084, %v1157
      %v1159 = vpop.f32.mrf.mxu0
      %v1160 = vadd.f32 %v1084, %v1159
      %1161 = vmatmul.bf16.gmra.mxu0 %v1063
      %v1162 = vpop.f32.mrf.mxu0
      %v1163 = vadd.f32 %v1084, %v1162
      %v1164 = vpop.f32.mrf.mxu0
      %v1165 = vadd.f32 %v1084, %v1164
      %1166 = vmatmul.bf16.gmra.mxu0 %v1064
      %v1167 = vpop.f32.mrf.mxu0
      %v1168 = vadd.f32 %v1084, %v1167
      %v1169 = vpop.f32.mrf.mxu0
      %v1170 = vadd.f32 %v1084, %v1169
      %1171 = vmatmul.bf16.gmra.mxu0 %v1065
      %v1172 = vpop.f32.mrf.mxu0
      %v1173 = vadd.f32 %v1084, %v1172
      %v1174 = vpop.f32.mrf.mxu0
      %v1175 = vadd.f32 %v1084, %v1174
      %1176 = vmatmul.bf16.gmra.mxu0 %v1066
      %v1177 = vpop.f32.mrf.mxu0
      %v1178 = vadd.f32 %v1084, %v1177
      %v1179 = vpop.f32.mrf.mxu0
      %v1180 = vadd.f32 %v1084, %v1179
      %1181 = vdwg.mxu0
      %vm1182 = vcmask 7168
      %1183 = vst.msk [vmem:[%s406] sm:$0xff] %vm1182, %v1143
      %1184 = vst.msk [vmem:[%s406 + $0x8] sm:$0xff] %vm1182, %v1145
      %1185 = vst.msk [vmem:[%s406 + $0x10] sm:$0xff] %vm1182, %v1148
      %1186 = vst.msk [vmem:[%s406 + $0x18] sm:$0xff] %vm1182, %v1150
      %1187 = vst.msk [vmem:[%s406 + $0x20] sm:$0xff] %vm1182, %v1153
      %1188 = vst.msk [vmem:[%s406 + $0x28] sm:$0xff] %vm1182, %v1155
      %1189 = vst.msk [vmem:[%s406 + $0x30] sm:$0xff] %vm1182, %v1158
      %1190 = vst.msk [vmem:[%s406 + $0x38] sm:$0xff] %vm1182, %v1160
      %1191 = vst.msk [vmem:[%s406 + $0x40] sm:$0xff] %vm1182, %v1163
      %1192 = vst.msk [vmem:[%s406 + $0x48] sm:$0xff] %vm1182, %v1165
      %1193 = vst.msk [vmem:[%s406 + $0x50] sm:$0xff] %vm1182, %v1168
      %1194 = vst.msk [vmem:[%s406 + $0x58] sm:$0xff] %vm1182, %v1170
      %1195 = vst.msk [vmem:[%s406 + $0x60] sm:$0xff] %vm1182, %v1173
      %1196 = vst.msk [vmem:[%s406 + $0x68] sm:$0xff] %vm1182, %v1175
      %1197 = vst.msk [vmem:[%s406 + $0x70] sm:$0xff] %vm1182, %v1178
      %1198 = vst.msk [vmem:[%s406 + $0x78] sm:$0xff] %vm1182, %v1180
      %s1199 = smul.u32 16, %s22
      %p1200 = scmp.lt.s32.totalorder %s1199, 31
      %s1201 = scalar_select %p1200, %s1199, 31
      %s1202 = smul.addr %s1201, 8
      %s1203 = scalar_lea.vmem %s10, %s1202
      // Predicated region
      $region61: #{match_module_forward.1} parent=59 // pred_check
        %p1204 = pneg %p265
      $region62: #{match_module_forward.1} parent=59 // pred_check_branch
        %1206 = sbr.rel (%p1204) target = $region64
      $region63: #{match_module_forward.1} parent=59 // pred_region
        %s1207 = smul.u32 16, %s22
      $region64: #{match_module_forward.1} parent=59 // pred_fallthru
        _
    $region60: #{match_module_forward.1} parent=5 // pred_fallthru
      _
    %p1208 = scmp.le.s32.totalorder 2, %s17
    // Predicated region
    $region65: #{match_module_forward.1} parent=5 // pred_check
      %p1209 = pneg %p1208
    $region66: #{match_module_forward.1} parent=5 // pred_check_branch
      %1211 = sbr.rel (%p1209) target = $region68
    $region67: #{match_module_forward.1} parent=5 // pred_region
      %s1212 = ssub.s32 %s17, 2
      // Predicated region
      $region69: #{match_module_forward.1} parent=67 // pred_check
        %p1213 = pneg %p271
      $region70: #{match_module_forward.1} parent=67 // pred_check_branch
        %1215 = sbr.rel (%p1213) target = $region72
      $region71: #{match_module_forward.1} parent=67 // pred_region
        %s1216 = smul.u32 16, %s23
        %p1217 = scmp.lt.s32.totalorder %s1216, 31
        %s1218 = scalar_select %p1217, %s1216, 31
        %s1219 = smul.addr %s1218, 8
        %s1220 = scalar_lea.vmem %s10, %s1219
      $region72: #{match_module_forward.1} parent=67 // pred_fallthru
        _
    $region68: #{match_module_forward.1} parent=5 // pred_fallthru
      _
  $region6: #{match_module_forward.1} parent=0 // loop_footer
    %s21 = sadd.s32 1, %s17
  $region7: #{match_module_forward.1} parent=0 // loop_footer_branch
    %16 = sbr.rel target = $region3
  $region8: #{match_module_forward.1} parent=0 // loop_exit
    _

</llo_original>
